<compile_context>
chip_gen: v7x
topology: tpu7x:2x2x1
jax: 0.10.0
libtpu: 0.0.40
codegen_flags: <defaults>
</compile_context>

<pallas_src>
import functools

import jax
import jax.numpy as jnp
from jax.experimental import pallas as pl
from jax.experimental.pallas import tpu as pltpu

NEG_SLOPE = 0.01      # F.leaky_relu default negative_slope
HIDDEN = 256
A_PAD = 128           # actions padded to one full lane width (lane-dense output)


def _round_up(n, m):
    return ((n + m - 1) // m) * m


def _leaky_relu(x):
    # mul + max (2 VALU ops/elem) instead of cmp + mul + select (3 ops/elem).
    return jnp.maximum(x, NEG_SLOPE * x)


def _default_epilogue_dtype():
    """bf16 bias-add / leaky_relu epilogue on v6e/v7x (bf16 VPU); f32 otherwise."""
    try:
        kind = jax.devices()[0].device_kind.lower()
    except Exception:
        return jnp.float32
    if "v6" in kind or "v7" in kind or "7x" in kind:
        return jnp.bfloat16
    return jnp.float32   # v5e / v5p / v4: no bf16 VALU


def mlp_kernel(x_ref, w1_ref, b1_ref, w2_ref, b2_ref, w3_ref, b3_ref, o_ref):
    # Weights are bf16; MXU accumulates in f32 (preferred_element_type).
    # Bias-add + leaky_relu run in the epilogue dtype carried by the biases
    # (bf16 on v6e/v7x, f32 on v5e), then re-cast to bf16 for the next matmul.
    edt = b1_ref.dtype
    x = x_ref[...].astype(jnp.bfloat16)                 # (tm, states) — K padded by Mosaic

    h = jnp.dot(x, w1_ref[...], preferred_element_type=jnp.float32)
    h = _leaky_relu(h.astype(edt) + b1_ref[...]).astype(jnp.bfloat16)

    h = jnp.dot(h, w2_ref[...], preferred_element_type=jnp.float32)
    h = _leaky_relu(h.astype(edt) + b2_ref[...]).astype(jnp.bfloat16)

    o = jnp.dot(h, w3_ref[...], preferred_element_type=jnp.float32)
    o = o.astype(edt) + b3_ref[...]
    o_ref[...] = o.astype(o_ref.dtype)


def prepare_params(params, actions, epilogue_dtype=None):
    """Cast/pad parameters ONCE (not per call).

    Weights -> bf16 (w3 lane-padded to 128 for an unmasked, lane-dense output);
    biases -> epilogue dtype (bf16 on v6e/v7x, f32 on v5e).
    """
    if epilogue_dtype is None:
        epilogue_dtype = _default_epilogue_dtype()

    w1 = params["w1"].astype(jnp.bfloat16)                      # (states, 256)
    w2 = params["w2"].astype(jnp.bfloat16)                      # (256, 256)
    w3 = jnp.zeros((HIDDEN, A_PAD), jnp.bfloat16)
    w3 = w3.at[:, :actions].set(params["w3"].astype(jnp.bfloat16))

    b1 = params["b1"].reshape(1, HIDDEN).astype(epilogue_dtype)
    b2 = params["b2"].reshape(1, HIDDEN).astype(epilogue_dtype)
    b3 = jnp.zeros((1, A_PAD), epilogue_dtype)
    b3 = b3.at[:, :actions].set(params["b3"].reshape(1, -1).astype(epilogue_dtype))
    return {"w1": w1, "b1": b1, "w2": w2, "b2": b2, "w3": w3, "b3": b3}


def _choose_tm(batch, block_m):
    """Batch tile size. Full batch in one (full-dim) block when tiny; otherwise
    at least two grid steps (so v7x's 2 TCs both get work) capped at block_m."""
    if batch <= 8:
        return batch
    return min(block_m, max(8, _round_up(pl.cdiv(batch, 2), 8)))


@functools.partial(jax.jit,
                   static_argnames=("actions", "block_m", "trim", "out_dtype"))
def neural_network_policy_forward(x, padded_params, *, actions, block_m=1024,
                                  trim=True, out_dtype=jnp.float32):
    """x: (B, states) float32. padded_params from prepare_params().

    trim=True  -> returns (B, actions)          (faithful to the module)
    trim=False -> returns (B, 128) lane-dense    (skips the extra slice copy)
    """
    batch, states = x.shape
    w1, b1 = padded_params["w1"], padded_params["b1"]
    w2, b2 = padded_params["w2"], padded_params["b2"]
    w3, b3 = padded_params["w3"], padded_params["b3"]

    tm = _choose_tm(batch, block_m)
    grid = (pl.cdiv(batch, tm),)

    param_bytes = sum(int(v.size) * v.dtype.itemsize for v in padded_params.values())
    cost = pl.CostEstimate(
        flops=2 * batch * (states * HIDDEN + HIDDEN * HIDDEN + HIDDEN * A_PAD),
        transcendentals=0,
        bytes_accessed=(batch * states * x.dtype.itemsize
                        + param_bytes
                        + batch * A_PAD * jnp.dtype(out_dtype).itemsize),
    )

    out = pl.pallas_call(
        mlp_kernel,
        out_shape=jax.ShapeDtypeStruct((batch, A_PAD), out_dtype),
        grid=grid,
        in_specs=[
            pl.BlockSpec((tm, states), lambda i: (i, 0)),       # x tile (pipelined)
            pl.BlockSpec((states, HIDDEN), lambda i: (0, 0)),   # w1 (resident)
            pl.BlockSpec((1, HIDDEN), lambda i: (0, 0)),        # b1
            pl.BlockSpec((HIDDEN, HIDDEN), lambda i: (0, 0)),   # w2
            pl.BlockSpec((1, HIDDEN), lambda i: (0, 0)),        # b2
            pl.BlockSpec((HIDDEN, A_PAD), lambda i: (0, 0)),    # w3
            pl.BlockSpec((1, A_PAD), lambda i: (0, 0)),         # b3
        ],
        out_specs=pl.BlockSpec((tm, A_PAD), lambda i: (i, 0)),
        compiler_params=pltpu.CompilerParams(
            dimension_semantics=("parallel",)),
        cost_estimate=cost,
    )(x, w1, b1, w2, b2, w3, b3)

    if trim:
        return out[:, :actions]
    return out


def init_params(key, states=10, hidden=HIDDEN, actions=27):
    """Deterministic synthetic parameters (PyTorch-Linear-like uniform init)."""
    ks = jax.random.split(key, 6)

    def linear(kw, kb, fan_in, fan_out):
        bound = 1.0 / jnp.sqrt(fan_in)
        w = jax.random.uniform(kw, (fan_in, fan_out), jnp.float32, -bound, bound)
        b = jax.random.uniform(kb, (1, fan_out), jnp.float32, -bound, bound)
        return w, b

    w1, b1 = linear(ks[0], ks[1], states, hidden)
    w2, b2 = linear(ks[2], ks[3], hidden, hidden)
    w3, b3 = linear(ks[4], ks[5], hidden, actions)
    return {"w1": w1, "b1": b1, "w2": w2, "b2": b2, "w3": w3, "b3": b3}


def reference_forward(x, padded_params, actions):
    """Plain-JAX reference with the SAME dtype flow as the kernel."""
    edt = padded_params["b1"].dtype
    h = jnp.dot(x.astype(jnp.bfloat16), padded_params["w1"],
                preferred_element_type=jnp.float32)
    h = _leaky_relu(h.astype(edt) + padded_params["b1"]).astype(jnp.bfloat16)
    h = jnp.dot(h, padded_params["w2"], preferred_element_type=jnp.float32)
    h = _leaky_relu(h.astype(edt) + padded_params["b2"]).astype(jnp.bfloat16)
    o = jnp.dot(h, padded_params["w3"], preferred_element_type=jnp.float32)
    o = o.astype(edt) + padded_params["b3"]
    return o.astype(jnp.float32)[:, :actions]


if __name__ == "__main__":
    key = jax.random.PRNGKey(0)
    k_params, k_small, k_big, k_rag = jax.random.split(key, 4)

    STATES, ACTIONS = 10, 27
    params = init_params(k_params, states=STATES, hidden=HIDDEN, actions=ACTIONS)
    padded = prepare_params(params, actions=ACTIONS)   # once, outside the hot loop

    # Small batch (matches the original module's typical RL usage, B=2).
    x_small = jax.random.normal(k_small, (2, STATES), jnp.float32)
    out_small = jax.block_until_ready(
        neural_network_policy_forward(x_small, padded, actions=ACTIONS))
    ref_small = reference_forward(x_small, padded, ACTIONS)
    assert out_small.shape == (2, ACTIONS)
    assert jnp.allclose(out_small, ref_small, atol=2e-2, rtol=2e-2), \
        "mismatch vs reference (B=2)"

    # Larger batch: exercises the 2-step parallel grid (256-row tiles).
    x_big = jax.random.normal(k_big, (512, STATES), jnp.float32)
    out_big = jax.block_until_ready(
        neural_network_policy_forward(x_big, padded, actions=ACTIONS))
    ref_big = reference_forward(x_big, padded, ACTIONS)
    assert out_big.shape == (512, ACTIONS)
    assert jnp.allclose(out_big, ref_big, atol=2e-2, rtol=2e-2), \
        "mismatch vs reference (B=512)"

    # Ragged final tile + untrimmed lane-dense fast path.
    x_rag = jax.random.normal(k_rag, (300, STATES), jnp.float32)
    out_rag = jax.block_until_ready(
        neural_network_policy_forward(x_rag, padded, actions=ACTIONS, trim=False))
    ref_rag = reference_forward(x_rag, padded, ACTIONS)
    assert out_rag.shape == (300, A_PAD)
    assert jnp.allclose(out_rag[:, :ACTIONS], ref_rag, atol=2e-2, rtol=2e-2), \
        "mismatch vs reference (B=300, ragged)"

    print("KERNEL_OK")
</pallas_src>

<mosaic_0001>
module attributes {stable_mosaic.version = 11 : i64} {
  func.func @mlp_kernel(%arg0: i32, %arg1: memref<2x10xf32, #tpu.memory_space<vmem>>, %arg2: memref<10x256xbf16, #tpu.memory_space<vmem>>, %arg3: memref<1x256xf32, #tpu.memory_space<vmem>>, %arg4: memref<256x256xbf16, #tpu.memory_space<vmem>>, %arg5: memref<1x256xf32, #tpu.memory_space<vmem>>, %arg6: memref<256x128xbf16, #tpu.memory_space<vmem>>, %arg7: memref<1x128xf32, #tpu.memory_space<vmem>>, %arg8: memref<2x128xf32, #tpu.memory_space<vmem>>) attributes {dimension_semantics = [#tpu.dimension_semantics<parallel>], iteration_bounds = array<i64: 1>, scalar_prefetch = 0 : i64, scratch_operands = 0 : i64, tpu.core_type = #tpu.core_type<tc>, window_params = [{transform_indices = @transform_0, window_bounds = array<i64: 2, 10>}, {pipeline_mode = #tpu.pipeline_mode<synchronous>, transform_indices = @transform_1, window_bounds = array<i64: 10, 256>}, {pipeline_mode = #tpu.pipeline_mode<synchronous>, transform_indices = @transform_2, window_bounds = array<i64: 1, 256>}, {pipeline_mode = #tpu.pipeline_mode<synchronous>, transform_indices = @transform_3, window_bounds = array<i64: 256, 256>}, {pipeline_mode = #tpu.pipeline_mode<synchronous>, transform_indices = @transform_4, window_bounds = array<i64: 1, 256>}, {pipeline_mode = #tpu.pipeline_mode<synchronous>, transform_indices = @transform_5, window_bounds = array<i64: 256, 128>}, {pipeline_mode = #tpu.pipeline_mode<synchronous>, transform_indices = @transform_6, window_bounds = array<i64: 1, 128>}, {transform_indices = @transform_7, window_bounds = array<i64: 2, 128>}]} {
    %c0 = arith.constant 0 : index
    %c0_0 = arith.constant 0 : index
    %0 = vector.load %arg1[%c0, %c0_0] : memref<2x10xf32, #tpu.memory_space<vmem>>, vector<2x10xf32>
    %1 = arith.truncf %0 : vector<2x10xf32> to vector<2x10xbf16>
    %c0_1 = arith.constant 0 : index
    %c0_2 = arith.constant 0 : index
    %2 = vector.load %arg2[%c0_1, %c0_2] : memref<10x256xbf16, #tpu.memory_space<vmem>>, vector<10x256xbf16>
    %cst = arith.constant dense<0.000000e+00> : vector<2x256xf32>
    %3 = tpu.matmul %1, %2, %cst {dimension_numbers = #tpu.dot_dimension_numbers<[1], [0], [0], [1], [0, 0, 1, 1], [], []>} : vector<2x10xbf16>, vector<10x256xbf16>, vector<2x256xf32> -> vector<2x256xf32>
    %c0_3 = arith.constant 0 : index
    %c0_4 = arith.constant 0 : index
    %4 = vector.load %arg3[%c0_3, %c0_4] : memref<1x256xf32, #tpu.memory_space<vmem>>, vector<1x256xf32>
    %5 = vector.broadcast %4 : vector<1x256xf32> to vector<2x256xf32>
    %6 = arith.addf %3, %5 : vector<2x256xf32>
    %cst_5 = arith.constant 0.00999999977 : f32
    %7 = vector.broadcast %cst_5 : f32 to vector<2x256xf32>
    %8 = arith.mulf %7, %6 : vector<2x256xf32>
    %9 = arith.maximumf %6, %8 : vector<2x256xf32>
    %10 = arith.truncf %9 : vector<2x256xf32> to vector<2x256xbf16>
    %c0_6 = arith.constant 0 : index
    %c0_7 = arith.constant 0 : index
    %11 = vector.load %arg4[%c0_6, %c0_7] : memref<256x256xbf16, #tpu.memory_space<vmem>>, vector<256x256xbf16>
    %cst_8 = arith.constant dense<0.000000e+00> : vector<2x256xf32>
    %12 = tpu.matmul %10, %11, %cst_8 {dimension_numbers = #tpu.dot_dimension_numbers<[1], [0], [0], [1], [0, 0, 1, 1], [], []>} : vector<2x256xbf16>, vector<256x256xbf16>, vector<2x256xf32> -> vector<2x256xf32>
    %c0_9 = arith.constant 0 : index
    %c0_10 = arith.constant 0 : index
    %13 = vector.load %arg5[%c0_9, %c0_10] : memref<1x256xf32, #tpu.memory_space<vmem>>, vector<1x256xf32>
    %14 = vector.broadcast %13 : vector<1x256xf32> to vector<2x256xf32>
    %15 = arith.addf %12, %14 : vector<2x256xf32>
    %cst_11 = arith.constant 0.00999999977 : f32
    %16 = vector.broadcast %cst_11 : f32 to vector<2x256xf32>
    %17 = arith.mulf %16, %15 : vector<2x256xf32>
    %18 = arith.maximumf %15, %17 : vector<2x256xf32>
    %19 = arith.truncf %18 : vector<2x256xf32> to vector<2x256xbf16>
    %c0_12 = arith.constant 0 : index
    %c0_13 = arith.constant 0 : index
    %20 = vector.load %arg6[%c0_12, %c0_13] : memref<256x128xbf16, #tpu.memory_space<vmem>>, vector<256x128xbf16>
    %cst_14 = arith.constant dense<0.000000e+00> : vector<2x128xf32>
    %21 = tpu.matmul %19, %20, %cst_14 {dimension_numbers = #tpu.dot_dimension_numbers<[1], [0], [0], [1], [0, 0, 1, 1], [], []>} : vector<2x256xbf16>, vector<256x128xbf16>, vector<2x128xf32> -> vector<2x128xf32>
    %c0_15 = arith.constant 0 : index
    %c0_16 = arith.constant 0 : index
    %22 = vector.load %arg7[%c0_15, %c0_16] : memref<1x128xf32, #tpu.memory_space<vmem>>, vector<1x128xf32>
    %23 = vector.broadcast %22 : vector<1x128xf32> to vector<2x128xf32>
    %24 = arith.addf %21, %23 : vector<2x128xf32>
    %c0_17 = arith.constant 0 : index
    %c0_18 = arith.constant 0 : index
    %25 = vector.load %arg8[%c0_17, %c0_18] : memref<2x128xf32, #tpu.memory_space<vmem>>, vector<2x128xf32>
    tpu.vector_store %arg8[%c0_17, %c0_18], %24 {strides = array<i32>} : memref<2x128xf32, #tpu.memory_space<vmem>>, vector<2x128xf32>,
    return
  }
  func.func @transform_0(%arg0: i32) -> (i32, i32) {
    %c0_i32 = arith.constant 0 : i32
    %c0_i32_0 = arith.constant 0 : i32
    return %arg0, %c0_i32 : i32, i32
  }
  func.func @transform_1(%arg0: i32) -> (i32, i32) {
    %c0_i32 = arith.constant 0 : i32
    %c0_i32_0 = arith.constant 0 : i32
    %c0_i32_1 = arith.constant 0 : i32
    return %c0_i32, %c0_i32_0 : i32, i32
  }
  func.func @transform_2(%arg0: i32) -> (i32, i32) {
    %c0_i32 = arith.constant 0 : i32
    %c0_i32_0 = arith.constant 0 : i32
    %c0_i32_1 = arith.constant 0 : i32
    return %c0_i32, %c0_i32_0 : i32, i32
  }
  func.func @transform_3(%arg0: i32) -> (i32, i32) {
    %c0_i32 = arith.constant 0 : i32
    %c0_i32_0 = arith.constant 0 : i32
    %c0_i32_1 = arith.constant 0 : i32
    return %c0_i32, %c0_i32_0 : i32, i32
  }
  func.func @transform_4(%arg0: i32) -> (i32, i32) {
    %c0_i32 = arith.constant 0 : i32
    %c0_i32_0 = arith.constant 0 : i32
    %c0_i32_1 = arith.constant 0 : i32
    return %c0_i32, %c0_i32_0 : i32, i32
  }
  func.func @transform_5(%arg0: i32) -> (i32, i32) {
    %c0_i32 = arith.constant 0 : i32
    %c0_i32_0 = arith.constant 0 : i32
    %c0_i32_1 = arith.constant 0 : i32
    return %c0_i32, %c0_i32_0 : i32, i32
  }
  func.func @transform_6(%arg0: i32) -> (i32, i32) {
    %c0_i32 = arith.constant 0 : i32
    %c0_i32_0 = arith.constant 0 : i32
    %c0_i32_1 = arith.constant 0 : i32
    return %c0_i32, %c0_i32_0 : i32, i32
  }
  func.func @transform_7(%arg0: i32) -> (i32, i32) {
    %c0_i32 = arith.constant 0 : i32
    %c0_i32_0 = arith.constant 0 : i32
    return %arg0, %c0_i32 : i32, i32
  }
}

</mosaic_0001>

<llo_original>
// kernel: neural_network_policy_forward.1
$region0: #{neural_network_policy_forward.1}
  #allocation0 [shape = 'u32[]', space=smem, size = 0x4, offset = 0x4, fixed_abs, tag = 'smem constant byte address 0x4 - core index']
  #allocation1 [shape = 'u32[144,128]{1,0:T(1,128)}', space=vmem, size = 0x12000, scoped, tag = 'internal scratch']
  %s0 = inlined_call_operand.hbm [shape: f32[2,10], index: 0, kind: input, shape index: {}]
  %s1 = inlined_call_operand.hbm [shape: bf16[10,256], index: 1, kind: input, shape index: {}]
  %s2 = inlined_call_operand.vmem [shape: f32[1,256], index: 2, kind: input, shape index: {}]
  %s3 = inlined_call_operand.hbm [shape: bf16[256,256], index: 3, kind: input, shape index: {}]
  %s4 = inlined_call_operand.vmem [shape: f32[1,256], index: 4, kind: input, shape index: {}]
  %s5 = inlined_call_operand.hbm [shape: bf16[256,128], index: 5, kind: input, shape index: {}]
  %s6 = inlined_call_operand.vmem [shape: f32[1,128], index: 6, kind: input, shape index: {}]
  %s7 = inlined_call_operand.hbm [shape: f32[2,128], index: 7, kind: output, shape index: {}]
  %s8 = sld [smem:[#allocation0]]
  $region54: #{neural_network_policy_forward.1} parent=0
    _
  %s10 = ssub.s32 1, %s8
  %s11 = scalar_select 0, %s10, %s8
  $region1: #{neural_network_policy_forward.1} parent=0
    #allocation2 [shape = 'u8[1024]{0}', space=vmem, size = 0x400, scoped, tag = 'input window, operand 0, single buffered']
    #allocation3 [shape = 's32[1]{0}', space=sflag, size = 0x4, scoped, tag = 'scoped memory for neural_network_policy_forward.1']
    #allocation4 [shape = 's32[1]{0}', space=sflag, size = 0x4, scoped, tag = 'scoped memory for neural_network_policy_forward.1']
    #allocation5 [shape = 'u8[8192]{0}', space=vmem, size = 0x2000, scoped, tag = 'input window, operand 1, single buffered']
    #allocation6 [shape = 's32[1]{0}', space=sflag, size = 0x4, scoped, tag = 'scoped memory for neural_network_policy_forward.1']
    #allocation7 [shape = 'u8[131072]{0}', space=vmem, size = 0x20000, scoped, tag = 'input window, operand 3, single buffered']
    #allocation8 [shape = 'u8[65536]{0}', space=vmem, size = 0x10000, scoped, tag = 'input window, operand 5, single buffered']
    #allocation9 [shape = 's32[1]{0}', space=sflag, size = 0x4, scoped, tag = 'scoped memory for neural_network_policy_forward.1']
    #allocation10 [shape = 'u8[1024]{0}', space=vmem, size = 0x400, scoped, tag = 'output window, operand 0, single buffered']
    %12 = vsyncpa [#allocation3], 0
    %13 = vsyncpa [#allocation6], 0
    %14 = vsyncpa [#allocation9], 0
    %15 = vsyncpa [#allocation4], 0
    // Predicated region
    $region2: #{neural_network_policy_forward.1} parent=1 // pred_check
      _
    $region3: #{neural_network_policy_forward.1} parent=1 // pred_check_branch
      %17 = sbr.rel (0) target = $region5
    $region4: #{neural_network_policy_forward.1} parent=1 // pred_region
      %s19 = ssub.s32 32, 32
      %20 = vsyncadd [#allocation3], %s19
      %s22 = sshll.u32 [#allocation2], 4
      %s23 = int_to_ptr.vmem [resolvable:$true] %s22
      %25 = dma.hbm_to_vmem [thread:$0]  %s0, 32, %s23, [#allocation3]
    $region5: #{neural_network_policy_forward.1} parent=1 // pred_fallthru
      _
    // Predicated region
    $region6: #{neural_network_policy_forward.1} parent=1 // pred_check
      _
    $region7: #{neural_network_policy_forward.1} parent=1 // pred_check_branch
      %27 = sbr.rel (0) target = $region9
    $region8: #{neural_network_policy_forward.1} parent=1 // pred_region
      %s29 = ssub.s32 256, 256
      %30 = vsyncadd [#allocation6], %s29
      %s31 = sshll.u32 [#allocation5], 4
      %s32 = int_to_ptr.vmem [resolvable:$true] %s31
      %37 = dma.hbm_to_vmem [thread:$0]  %s1, 256, %s32, [#allocation6], 128, 128, 8
    $region9: #{neural_network_policy_forward.1} parent=1 // pred_fallthru
      _
    // Predicated region
    $region10: #{neural_network_policy_forward.1} parent=1 // pred_check
      _
    $region11: #{neural_network_policy_forward.1} parent=1 // pred_check_branch
      %39 = sbr.rel (0) target = $region13
    $region12: #{neural_network_policy_forward.1} parent=1 // pred_region
      _
    $region13: #{neural_network_policy_forward.1} parent=1 // pred_fallthru
      _
    // Predicated region
    $region14: #{neural_network_policy_forward.1} parent=1 // pred_check
      _
    $region15: #{neural_network_policy_forward.1} parent=1 // pred_check_branch
      %41 = sbr.rel (0) target = $region17
    $region16: #{neural_network_policy_forward.1} parent=1 // pred_region
      %s43 = ssub.s32 4096, 4096
      %44 = vsyncadd [#allocation6], %s43
      %s45 = sshll.u32 [#allocation7], 4
      %s46 = int_to_ptr.vmem [resolvable:$true] %s45
      %51 = dma.hbm_to_vmem [thread:$0]  %s3, 4096, %s46, [#allocation6], 128, 128, 8
    $region17: #{neural_network_policy_forward.1} parent=1 // pred_fallthru
      _
    // Predicated region
    $region18: #{neural_network_policy_forward.1} parent=1 // pred_check
      _
    $region19: #{neural_network_policy_forward.1} parent=1 // pred_check_branch
      %53 = sbr.rel (0) target = $region21
    $region20: #{neural_network_policy_forward.1} parent=1 // pred_region
      _
    $region21: #{neural_network_policy_forward.1} parent=1 // pred_fallthru
      _
    // Predicated region
    $region22: #{neural_network_policy_forward.1} parent=1 // pred_check
      _
    $region23: #{neural_network_policy_forward.1} parent=1 // pred_check_branch
      %55 = sbr.rel (0) target = $region25
    $region24: #{neural_network_policy_forward.1} parent=1 // pred_region
      %s57 = ssub.s32 2048, 2048
      %58 = vsyncadd [#allocation9], %s57
      %s59 = sshll.u32 [#allocation8], 4
      %s60 = int_to_ptr.vmem [resolvable:$true] %s59
      %65 = dma.hbm_to_vmem [thread:$0]  %s5, 2048, %s60, [#allocation9], 64, 64, 4
    $region25: #{neural_network_policy_forward.1} parent=1 // pred_fallthru
      _
    // Predicated region
    $region26: #{neural_network_policy_forward.1} parent=1 // pred_check
      _
    $region27: #{neural_network_policy_forward.1} parent=1 // pred_check_branch
      %67 = sbr.rel (0) target = $region29
    $region28: #{neural_network_policy_forward.1} parent=1 // pred_region
      _
    $region29: #{neural_network_policy_forward.1} parent=1 // pred_fallthru
      _
    // Predicated region
    $region30: #{neural_network_policy_forward.1} parent=1 // pred_check
      _
    $region31: #{neural_network_policy_forward.1} parent=1 // pred_check_branch
      %69 = sbr.rel (0) target = $region33
    $region32: #{neural_network_policy_forward.1} parent=1 // pred_region
      %70 = dma.done [#allocation3], 32
    $region33: #{neural_network_policy_forward.1} parent=1 // pred_fallthru
      _
    // Predicated region
    $region34: #{neural_network_policy_forward.1} parent=1 // pred_check
      _
    $region35: #{neural_network_policy_forward.1} parent=1 // pred_check_branch
      %72 = sbr.rel (0) target = $region37
    $region36: #{neural_network_policy_forward.1} parent=1 // pred_region
      %73 = dma.done [#allocation6], 256
    $region37: #{neural_network_policy_forward.1} parent=1 // pred_fallthru
      _
    // Predicated region
    $region38: #{neural_network_policy_forward.1} parent=1 // pred_check
      _
    $region39: #{neural_network_policy_forward.1} parent=1 // pred_check_branch
      %75 = sbr.rel (0) target = $region41
    $region40: #{neural_network_policy_forward.1} parent=1 // pred_region
      %76 = dma.done [#allocation6], 4096
    $region41: #{neural_network_policy_forward.1} parent=1 // pred_fallthru
      _
    // Predicated region
    $region42: #{neural_network_policy_forward.1} parent=1 // pred_check
      _
    $region43: #{neural_network_policy_forward.1} parent=1 // pred_check_branch
      %78 = sbr.rel (0) target = $region45
    $region44: #{neural_network_policy_forward.1} parent=1 // pred_region
      %79 = dma.done [#allocation9], 2048
    $region45: #{neural_network_policy_forward.1} parent=1 // pred_fallthru
      _
    %v81 = vld [vmem:[#allocation2] sm:$0x3]
    %v82 = vpack.c.bf16 %v81, %v81
    %v83 = vld [vmem:[#allocation5] sm:$0xff]
    %v84 = vld [vmem:[#allocation5 + $0x8] sm:$0x11]
    %v85 = vld [vmem:[%s2] sm:$0x3]
    %v87 = vlaneseq
    %v88 = vshrl.u32 %v87, 7
    %v89 = vsub.s32 0, %v88
    %v90 = vrot.slane %v85, %v89
    %v91 = vlaneseq
    %v92 = vshrl.u32 %v91, 7
    %v93 = vsub.s32 1, %v92
    %v94 = vrot.slane %v85, %v93
    %v99 = vunpack.c.l.b16 %v83
    %v100 = vunpack.c.h.b16 %v83
    %v101 = vunpack.c.l.b16 %v84
    %v102 = vunpack.c.h.b16 %v84
    %v103 = vpack.c.b16 %v101, %v99
    %v104 = vpack.c.b16 %v102, %v100
    %vm105 = vcmask 80896
    %v107 = vsel %vm105, %v82, 0
    %vm109 = vcmask 1044480
    %v111 = vsel %vm109, %v103, 0
    %v114 = vsel %vm109, %v104, 0
    %116 = vmatprep.subr.bf16.mxu0 %v114
    %117 = vmatpush1.bf16.msra.mxu0 %v111
    %118 = vmatprep.subr.bf16.mxu0 0
    %119 = vmatpush1.bf16.msra.mxu0 0
    %120 = vmatprep.subr.bf16.mxu0 0
    %121 = vmatpush1.bf16.msra.mxu0 0
    %122 = vmatprep.subr.bf16.mxu0 0
    %123 = vmatpush1.bf16.msra.mxu0 0
    %124 = vmatprep.subr.bf16.mxu0 0
    %125 = vmatpush1.bf16.msra.mxu0 0
    %126 = vmatprep.subr.bf16.mxu0 0
    %127 = vmatpush1.bf16.msra.mxu0 0
    %128 = vmatprep.subr.bf16.mxu0 0
    %129 = vmatpush1.bf16.msra.mxu0 0
    %130 = vmatprep.subr.bf16.mxu0 0
    %131 = vmatpush1.bf16.msra.mxu0 0
    %132 = vmatprep.subr.bf16.mxu0 0
    %133 = vmatpush1.bf16.msra.mxu0 0
    %134 = vmatprep.subr.bf16.mxu0 0
    %135 = vmatpush1.bf16.msra.mxu0 0
    %136 = vmatprep.subr.bf16.mxu0 0
    %137 = vmatpush1.bf16.msra.mxu0 0
    %138 = vmatprep.subr.bf16.mxu0 0
    %139 = vmatpush1.bf16.msra.mxu0 0
    %140 = vmatprep.subr.bf16.mxu0 0
    %141 = vmatpush1.bf16.msra.mxu0 0
    %142 = vmatprep.subr.bf16.mxu0 0
    %143 = vmatpush1.bf16.msra.mxu0 0
    %144 = vmatprep.subr.bf16.mxu0 0
    %145 = vmatpush1.bf16.msra.mxu0 0
    %146 = vmatprep.subr.bf16.mxu0 0
    %147 = vmatpush1.bf16.msra.mxu0 0
    %148 = vmatprep.mubr.bf16.mxu0 0
    %149 = vmatmul.mubr.bf16.gmra.mrb[0].mxu0 %v107
    %v150 = vpop.f32.mrb[0].mxu0
    %v151 = vadd.f32 %v90, %v150
    %v152 = vpop.f32.mrb[0].mxu0
    %v153 = vadd.f32 %v94, %v152
    %v154 = vpop.f32.mrb[0].mxu0
    %v155 = vpop.f32.mrb[0].mxu0
    %156 = vdwg.mxu0
    %v157 = vmul.f32 %v151, 0.01
    %v158 = vmul.f32 %v153, 0.01
    %v159 = vmax.f32 %v151, %v157
    %v160 = vmax.f32 %v153, %v158
    %v161 = vpack.c.bf16 %v159, %v159
    %v162 = vpack.c.bf16 %v160, %v160
    %v163 = vld [vmem:[#allocation7] sm:$0xff]
    %v164 = vld [vmem:[#allocation7 + $0x8] sm:$0xff]
    %v165 = vld [vmem:[#allocation7 + $0x10] sm:$0xff]
    %v166 = vld [vmem:[#allocation7 + $0x18] sm:$0xff]
    %v167 = vld [vmem:[#allocation7 + $0x20] sm:$0xff]
    %v168 = vld [vmem:[#allocation7 + $0x28] sm:$0xff]
    %v169 = vld [vmem:[#allocation7 + $0x30] sm:$0xff]
    %v170 = vld [vmem:[#allocation7 + $0x38] sm:$0xff]
    %v171 = vld [vmem:[#allocation7 + $0x40] sm:$0xff]
    %v172 = vld [vmem:[#allocation7 + $0x48] sm:$0xff]
    %v173 = vld [vmem:[#allocation7 + $0x50] sm:$0xff]
    %v174 = vld [vmem:[#allocation7 + $0x58] sm:$0xff]
    %v175 = vld [vmem:[#allocation7 + $0x60] sm:$0xff]
    %v176 = vld [vmem:[#allocation7 + $0x68] sm:$0xff]
    %v177 = vld [vmem:[#allocation7 + $0x70] sm:$0xff]
    %v178 = vld [vmem:[#allocation7 + $0x78] sm:$0xff]
    %v179 = vld [vmem:[#allocation7 + $0x80] sm:$0xff]
    %v180 = vld [vmem:[#allocation7 + $0x88] sm:$0xff]
    %v181 = vld [vmem:[#allocation7 + $0x90] sm:$0xff]
    %v182 = vld [vmem:[#allocation7 + $0x98] sm:$0xff]
    %v183 = vld [vmem:[#allocation7 + $0xa0] sm:$0xff]
    %v184 = vld [vmem:[#allocation7 + $0xa8] sm:$0xff]
    %v185 = vld [vmem:[#allocation7 + $0xb0] sm:$0xff]
    %v186 = vld [vmem:[#allocation7 + $0xb8] sm:$0xff]
    %v187 = vld [vmem:[#allocation7 + $0xc0] sm:$0xff]
    %v188 = vld [vmem:[#allocation7 + $0xc8] sm:$0xff]
    %v189 = vld [vmem:[#allocation7 + $0xd0] sm:$0xff]
    %v190 = vld [vmem:[#allocation7 + $0xd8] sm:$0xff]
    %v191 = vld [vmem:[#allocation7 + $0xe0] sm:$0xff]
    %v192 = vld [vmem:[#allocation7 + $0xe8] sm:$0xff]
    %v193 = vld [vmem:[#allocation7 + $0xf0] sm:$0xff]
    %v194 = vld [vmem:[#allocation7 + $0xf8] sm:$0xff]
    %v195 = vld [vmem:[%s4] sm:$0x3]
    %v197 = vlaneseq
    %v198 = vshrl.u32 %v197, 7
    %v199 = vsub.s32 0, %v198
    %v200 = vrot.slane %v195, %v199
    %v201 = vlaneseq
    %v202 = vshrl.u32 %v201, 7
    %v203 = vsub.s32 1, %v202
    %v204 = vrot.slane %v195, %v203
    %v239 = vunpack.c.l.b16 %v163
    %v240 = vunpack.c.h.b16 %v163
    %v241 = vunpack.c.l.b16 %v164
    %v242 = vunpack.c.h.b16 %v164
    %v243 = vunpack.c.l.b16 %v165
    %v244 = vunpack.c.h.b16 %v165
    %v245 = vunpack.c.l.b16 %v166
    %v246 = vunpack.c.h.b16 %v166
    %v247 = vunpack.c.l.b16 %v167
    %v248 = vunpack.c.h.b16 %v167
    %v249 = vunpack.c.l.b16 %v168
    %v250 = vunpack.c.h.b16 %v168
    %v251 = vunpack.c.l.b16 %v169
    %v252 = vunpack.c.h.b16 %v169
    %v253 = vunpack.c.l.b16 %v170
    %v254 = vunpack.c.h.b16 %v170
    %v255 = vunpack.c.l.b16 %v171
    %v256 = vunpack.c.h.b16 %v171
    %v257 = vunpack.c.l.b16 %v172
    %v258 = vunpack.c.h.b16 %v172
    %v259 = vunpack.c.l.b16 %v173
    %v260 = vunpack.c.h.b16 %v173
    %v261 = vunpack.c.l.b16 %v174
    %v262 = vunpack.c.h.b16 %v174
    %v263 = vunpack.c.l.b16 %v175
    %v264 = vunpack.c.h.b16 %v175
    %v265 = vunpack.c.l.b16 %v176
    %v266 = vunpack.c.h.b16 %v176
    %v267 = vunpack.c.l.b16 %v177
    %v268 = vunpack.c.h.b16 %v177
    %v269 = vunpack.c.l.b16 %v178
    %v270 = vunpack.c.h.b16 %v178
    %v271 = vunpack.c.l.b16 %v179
    %v272 = vunpack.c.h.b16 %v179
    %v273 = vunpack.c.l.b16 %v180
    %v274 = vunpack.c.h.b16 %v180
    %v275 = vunpack.c.l.b16 %v181
    %v276 = vunpack.c.h.b16 %v181
    %v277 = vunpack.c.l.b16 %v182
    %v278 = vunpack.c.h.b16 %v182
    %v279 = vunpack.c.l.b16 %v183
    %v280 = vunpack.c.h.b16 %v183
    %v281 = vunpack.c.l.b16 %v184
    %v282 = vunpack.c.h.b16 %v184
    %v283 = vunpack.c.l.b16 %v185
    %v284 = vunpack.c.h.b16 %v185
    %v285 = vunpack.c.l.b16 %v186
    %v286 = vunpack.c.h.b16 %v186
    %v287 = vunpack.c.l.b16 %v187
    %v288 = vunpack.c.h.b16 %v187
    %v289 = vunpack.c.l.b16 %v188
    %v290 = vunpack.c.h.b16 %v188
    %v291 = vunpack.c.l.b16 %v189
    %v292 = vunpack.c.h.b16 %v189
    %v293 = vunpack.c.l.b16 %v190
    %v294 = vunpack.c.h.b16 %v190
    %v295 = vunpack.c.l.b16 %v191
    %v296 = vunpack.c.h.b16 %v191
    %v297 = vunpack.c.l.b16 %v192
    %v298 = vunpack.c.h.b16 %v192
    %v299 = vunpack.c.l.b16 %v193
    %v300 = vunpack.c.h.b16 %v193
    %v301 = vunpack.c.l.b16 %v194
    %v302 = vunpack.c.h.b16 %v194
    %v303 = vpack.c.b16 %v241, %v239
    %v304 = vpack.c.b16 %v242, %v240
    %v305 = vpack.c.b16 %v245, %v243
    %v306 = vpack.c.b16 %v246, %v244
    %v307 = vpack.c.b16 %v249, %v247
    %v308 = vpack.c.b16 %v250, %v248
    %v309 = vpack.c.b16 %v253, %v251
    %v310 = vpack.c.b16 %v254, %v252
    %v311 = vpack.c.b16 %v257, %v255
    %v312 = vpack.c.b16 %v258, %v256
    %v313 = vpack.c.b16 %v261, %v259
    %v314 = vpack.c.b16 %v262, %v260
    %v315 = vpack.c.b16 %v265, %v263
    %v316 = vpack.c.b16 %v266, %v264
    %v317 = vpack.c.b16 %v269, %v267
    %v318 = vpack.c.b16 %v270, %v268
    %v319 = vpack.c.b16 %v273, %v271
    %v320 = vpack.c.b16 %v274, %v272
    %v321 = vpack.c.b16 %v277, %v275
    %v322 = vpack.c.b16 %v278, %v276
    %v323 = vpack.c.b16 %v281, %v279
    %v324 = vpack.c.b16 %v282, %v280
    %v325 = vpack.c.b16 %v285, %v283
    %v326 = vpack.c.b16 %v286, %v284
    %v327 = vpack.c.b16 %v289, %v287
    %v328 = vpack.c.b16 %v290, %v288
    %v329 = vpack.c.b16 %v293, %v291
    %v330 = vpack.c.b16 %v294, %v292
    %v331 = vpack.c.b16 %v297, %v295
    %v332 = vpack.c.b16 %v298, %v296
    %v333 = vpack.c.b16 %v301, %v299
    %v334 = vpack.c.b16 %v302, %v300
    %367 = vmatprep.subr.bf16.mxu0 %v304
    %368 = vmatpush1.bf16.msra.mxu0 %v303
    %369 = vmatprep.subr.bf16.mxu0 %v306
    %370 = vmatpush1.bf16.msra.mxu0 %v305
    %371 = vmatprep.subr.bf16.mxu0 %v308
    %372 = vmatpush1.bf16.msra.mxu0 %v307
    %373 = vmatprep.subr.bf16.mxu0 %v310
    %374 = vmatpush1.bf16.msra.mxu0 %v309
    %375 = vmatprep.subr.bf16.mxu0 %v312
    %376 = vmatpush1.bf16.msra.mxu0 %v311
    %377 = vmatprep.subr.bf16.mxu0 %v314
    %378 = vmatpush1.bf16.msra.mxu0 %v313
    %379 = vmatprep.subr.bf16.mxu0 %v316
    %380 = vmatpush1.bf16.msra.mxu0 %v315
    %381 = vmatprep.subr.bf16.mxu0 %v318
    %382 = vmatpush1.bf16.msra.mxu0 %v317
    %383 = vmatprep.subr.bf16.mxu0 %v320
    %384 = vmatpush1.bf16.msra.mxu0 %v319
    %385 = vmatprep.subr.bf16.mxu0 %v322
    %386 = vmatpush1.bf16.msra.mxu0 %v321
    %387 = vmatprep.subr.bf16.mxu0 %v324
    %388 = vmatpush1.bf16.msra.mxu0 %v323
    %389 = vmatprep.subr.bf16.mxu0 %v326
    %390 = vmatpush1.bf16.msra.mxu0 %v325
    %391 = vmatprep.subr.bf16.mxu0 %v328
    %392 = vmatpush1.bf16.msra.mxu0 %v327
    %393 = vmatprep.subr.bf16.mxu0 %v330
    %394 = vmatpush1.bf16.msra.mxu0 %v329
    %395 = vmatprep.subr.bf16.mxu0 %v332
    %396 = vmatpush1.bf16.msra.mxu0 %v331
    %397 = vmatprep.subr.bf16.mxu0 %v334
    %398 = vmatpush1.bf16.msra.mxu0 %v333
    %399 = vmatprep.mubr.bf16.mxu0 %v162
    %400 = vmatmul.mubr.bf16.gmra.mrb[0].mxu0 %v161
    %v401 = vpop.f32.mrb[0].mxu0
    %v402 = vadd.f32 %v200, %v401
    %v403 = vpop.f32.mrb[0].mxu0
    %v404 = vadd.f32 %v204, %v403
    %v405 = vpop.f32.mrb[0].mxu0
    %v406 = vpop.f32.mrb[0].mxu0
    %407 = vdwg.mxu0
    %v408 = vmul.f32 %v402, 0.01
    %v409 = vmul.f32 %v404, 0.01
    %v410 = vmax.f32 %v402, %v408
    %v411 = vmax.f32 %v404, %v409
    %v412 = vpack.c.bf16 %v410, %v410
    %v413 = vpack.c.bf16 %v411, %v411
    %v414 = vld [vmem:[#allocation8] sm:$0xf]
    %v415 = vld [vmem:[#allocation8 + $0x4] sm:$0xf]
    %v416 = vld [vmem:[#allocation8 + $0x8] sm:$0xf]
    %v417 = vld [vmem:[#allocation8 + $0xc] sm:$0xf]
    %v418 = vld [vmem:[#allocation8 + $0x10] sm:$0xf]
    %v419 = vld [vmem:[#allocation8 + $0x14] sm:$0xf]
    %v420 = vld [vmem:[#allocation8 + $0x18] sm:$0xf]
    %v421 = vld [vmem:[#allocation8 + $0x1c] sm:$0xf]
    %v422 = vld [vmem:[#allocation8 + $0x20] sm:$0xf]
    %v423 = vld [vmem:[#allocation8 + $0x24] sm:$0xf]
    %v424 = vld [vmem:[#allocation8 + $0x28] sm:$0xf]
    %v425 = vld [vmem:[#allocation8 + $0x2c] sm:$0xf]
    %v426 = vld [vmem:[#allocation8 + $0x30] sm:$0xf]
    %v427 = vld [vmem:[#allocation8 + $0x34] sm:$0xf]
    %v428 = vld [vmem:[#allocation8 + $0x38] sm:$0xf]
    %v429 = vld [vmem:[#allocation8 + $0x3c] sm:$0xf]
    %v430 = vld [vmem:[#allocation8 + $0x40] sm:$0xf]
    %v431 = vld [vmem:[#allocation8 + $0x44] sm:$0xf]
    %v432 = vld [vmem:[#allocation8 + $0x48] sm:$0xf]
    %v433 = vld [vmem:[#allocation8 + $0x4c] sm:$0xf]
    %v434 = vld [vmem:[#allocation8 + $0x50] sm:$0xf]
    %v435 = vld [vmem:[#allocation8 + $0x54] sm:$0xf]
    %v436 = vld [vmem:[#allocation8 + $0x58] sm:$0xf]
    %v437 = vld [vmem:[#allocation8 + $0x5c] sm:$0xf]
    %v438 = vld [vmem:[#allocation8 + $0x60] sm:$0xf]
    %v439 = vld [vmem:[#allocation8 + $0x64] sm:$0xf]
    %v440 = vld [vmem:[#allocation8 + $0x68] sm:$0xf]
    %v441 = vld [vmem:[#allocation8 + $0x6c] sm:$0xf]
    %v442 = vld [vmem:[#allocation8 + $0x70] sm:$0xf]
    %v443 = vld [vmem:[#allocation8 + $0x74] sm:$0xf]
    %v444 = vld [vmem:[#allocation8 + $0x78] sm:$0xf]
    %v445 = vld [vmem:[#allocation8 + $0x7c] sm:$0xf]
    %v446 = vld [vmem:[%s6] sm:$0x1]
    %v448 = vlaneseq
    %v449 = vshrl.u32 %v448, 7
    %v450 = vsub.s32 0, %v449
    %v451 = vrot.slane %v446, %v450
    %v485 = vunpack.c.l.b16 %v414
    %v486 = vunpack.c.l.b16 %v415
    %v487 = vunpack.c.l.b16 %v416
    %v488 = vunpack.c.l.b16 %v417
    %v489 = vunpack.c.l.b16 %v418
    %v490 = vunpack.c.l.b16 %v419
    %v491 = vunpack.c.l.b16 %v420
    %v492 = vunpack.c.l.b16 %v421
    %v493 = vunpack.c.l.b16 %v422
    %v494 = vunpack.c.l.b16 %v423
    %v495 = vunpack.c.l.b16 %v424
    %v496 = vunpack.c.l.b16 %v425
    %v497 = vunpack.c.l.b16 %v426
    %v498 = vunpack.c.l.b16 %v427
    %v499 = vunpack.c.l.b16 %v428
    %v500 = vunpack.c.l.b16 %v429
    %v501 = vunpack.c.l.b16 %v430
    %v502 = vunpack.c.l.b16 %v431
    %v503 = vunpack.c.l.b16 %v432
    %v504 = vunpack.c.l.b16 %v433
    %v505 = vunpack.c.l.b16 %v434
    %v506 = vunpack.c.l.b16 %v435
    %v507 = vunpack.c.l.b16 %v436
    %v508 = vunpack.c.l.b16 %v437
    %v509 = vunpack.c.l.b16 %v438
    %v510 = vunpack.c.l.b16 %v439
    %v511 = vunpack.c.l.b16 %v440
    %v512 = vunpack.c.l.b16 %v441
    %v513 = vunpack.c.l.b16 %v442
    %v514 = vunpack.c.l.b16 %v443
    %v515 = vunpack.c.l.b16 %v444
    %v516 = vunpack.c.l.b16 %v445
    %v517 = vpack.c.b16 %v486, %v485
    %v518 = vpack.c.b16 %v488, %v487
    %v519 = vpack.c.b16 %v490, %v489
    %v520 = vpack.c.b16 %v492, %v491
    %v521 = vpack.c.b16 %v494, %v493
    %v522 = vpack.c.b16 %v496, %v495
    %v523 = vpack.c.b16 %v498, %v497
    %v524 = vpack.c.b16 %v500, %v499
    %v525 = vpack.c.b16 %v502, %v501
    %v526 = vpack.c.b16 %v504, %v503
    %v527 = vpack.c.b16 %v506, %v505
    %v528 = vpack.c.b16 %v508, %v507
    %v529 = vpack.c.b16 %v510, %v509
    %v530 = vpack.c.b16 %v512, %v511
    %v531 = vpack.c.b16 %v514, %v513
    %v532 = vpack.c.b16 %v516, %v515
    %549 = vmatprep.subr.bf16.mxu0 0
    %550 = vmatpush1.bf16.msra.mxu0 %v517
    %551 = vmatprep.subr.bf16.mxu0 0
    %552 = vmatpush1.bf16.msra.mxu0 %v518
    %553 = vmatprep.subr.bf16.mxu0 0
    %554 = vmatpush1.bf16.msra.mxu0 %v519
    %555 = vmatprep.subr.bf16.mxu0 0
    %556 = vmatpush1.bf16.msra.mxu0 %v520
    %557 = vmatprep.subr.bf16.mxu0 0
    %558 = vmatpush1.bf16.msra.mxu0 %v521
    %559 = vmatprep.subr.bf16.mxu0 0
    %560 = vmatpush1.bf16.msra.mxu0 %v522
    %561 = vmatprep.subr.bf16.mxu0 0
    %562 = vmatpush1.bf16.msra.mxu0 %v523
    %563 = vmatprep.subr.bf16.mxu0 0
    %564 = vmatpush1.bf16.msra.mxu0 %v524
    %565 = vmatprep.subr.bf16.mxu0 0
    %566 = vmatpush1.bf16.msra.mxu0 %v525
    %567 = vmatprep.subr.bf16.mxu0 0
    %568 = vmatpush1.bf16.msra.mxu0 %v526
    %569 = vmatprep.subr.bf16.mxu0 0
    %570 = vmatpush1.bf16.msra.mxu0 %v527
    %571 = vmatprep.subr.bf16.mxu0 0
    %572 = vmatpush1.bf16.msra.mxu0 %v528
    %573 = vmatprep.subr.bf16.mxu0 0
    %574 = vmatpush1.bf16.msra.mxu0 %v529
    %575 = vmatprep.subr.bf16.mxu0 0
    %576 = vmatpush1.bf16.msra.mxu0 %v530
    %577 = vmatprep.subr.bf16.mxu0 0
    %578 = vmatpush1.bf16.msra.mxu0 %v531
    %579 = vmatprep.subr.bf16.mxu0 0
    %580 = vmatpush1.bf16.msra.mxu0 %v532
    %581 = vmatprep.mubr.bf16.mxu0 %v413
    %582 = vmatmul.mubr.bf16.gmra.mrb[0].mxu0 %v412
    %v583 = vpop.f32.mrb[0].mxu0
    %v584 = vadd.f32 %v451, %v583
    %v585 = vpop.f32.mrb[0].mxu0
    %v586 = vpop.f32.mrb[0].mxu0
    %v587 = vpop.f32.mrb[0].mxu0
    %588 = vdwg.mxu0
    %589 = vst [vmem:[#allocation10] sm:$0x3] %v584
    // Predicated region
    $region46: #{neural_network_policy_forward.1} parent=1 // pred_check
      _
    $region47: #{neural_network_policy_forward.1} parent=1 // pred_check_branch
      %591 = sbr.rel (0) target = $region49
    $region48: #{neural_network_policy_forward.1} parent=1 // pred_region
      %s593 = ssub.s32 32, 32
      %594 = vsyncadd [#allocation4], %s593
      %s596 = sshll.u32 [#allocation10], 4
      %s597 = int_to_ptr.vmem [resolvable:$true] %s596
      %599 = dma.vmem_to_hbm [thread:$0]  %s597, 32, %s7, [#allocation4]
    $region49: #{neural_network_policy_forward.1} parent=1 // pred_fallthru
      _
    // Predicated region
    $region50: #{neural_network_policy_forward.1} parent=1 // pred_check
      _
    $region51: #{neural_network_policy_forward.1} parent=1 // pred_check_branch
      %601 = sbr.rel (0) target = $region53
    $region52: #{neural_network_policy_forward.1} parent=1 // pred_region
      %602 = dma.done [#allocation4], 32
    $region53: #{neural_network_policy_forward.1} parent=1 // pred_fallthru
      _
    %603 = vsyncpa [#allocation3], 1
    %604 = vsyncpa [#allocation6], 1
    %605 = vsyncpa [#allocation9], 1
    %606 = vsyncpa [#allocation4], 1

</llo_original>
